<compile_context>
chip_gen: v7x
topology: tpu7x:2x2x1
jax: 0.10.0
libtpu: 0.0.40
codegen_flags: <defaults>
</compile_context>

<pallas_src>
import jax
import jax.numpy as jnp
from jax.experimental import pallas as pl
from jax.experimental.pallas import tpu as pltpu

_HIDDEN = 128
_LANES = 128


def _round_up(n, m):
    return ((n + m - 1) // m) * m


def _choose_tiling(batch, tile_b):
    """Return (tb, b_pad): lane-multiple batch tile and padded batch size."""
    b_min = _round_up(max(batch, 1), _LANES)          # lane-dense minimum
    tile_b = max(_LANES, _round_up(tile_b, _LANES))   # tile must be lane-multiple
    if b_min <= tile_b:
        return b_min, b_min                           # single tile covers batch
    n_tiles = -(-b_min // tile_b)                     # cdiv
    tb = _round_up(-(-b_min // n_tiles), _LANES)      # balance tiles, small tail
    return tb, tb * n_tiles


def policy_kernel(db_ref, x_ref, w1t_ref, b1t_ref, d_ref, out_ref):
    # db_ref : (1,) f32 in SMEM (scalar prefetch)  -- b2[0]-b2[1]
    # x_ref  : (3, TB)   feature-major input tile (lane-dense rows)
    # w1t_ref: (128, 3)  affine1 weight, transposed
    # b1t_ref: (128, 1)  affine1 bias, as a column
    # d_ref  : (128, 1)  w2[:,0]-w2[:,1], as a column
    # out_ref: (1, TB)   p0 = P(action=0), batch along lanes
    x = x_ref[...]            # (3, TB)
    w = w1t_ref[...]          # (128, 3)

    # affine1 as 3 broadcast FMAs on the VPU, feature-major -> h_T (128, TB).
    h = (w[:, 0:1] * x[0:1, :]
         + w[:, 1:2] * x[1:2, :]
         + w[:, 2:3] * x[2:3, :]
         + b1t_ref[...])      # (128, TB)

    # dropout (eval mode) -> identity; relu
    h = jnp.maximum(h, 0.0)

    # affine2 + 2-class softmax folded:
    #   softmax([s0, s1])[0] = sigmoid(s0 - s1) = sigmoid(h . d + db)
    # sublane reduce over the 128 hidden units -> XLU slot; exp -> EUP slot.
    diff = jnp.sum(h * d_ref[...], axis=0, keepdims=True) + db_ref[0]   # (1, TB)
    out_ref[...] = 1.0 / (1.0 + jnp.exp(-diff))


def policy_forward(x, w1, b1, w2, b2, *, tile_b=2048):
    """Pallas forward of Policy: softmax(affine2(relu(affine1(x))), dim=1).

    x: (B, 3) f32; w1: (3, 128); b1: (128,) or (1, 128); w2: (128, 2);
    b2: (2,) or (1, 2).  Returns (B, 2) action probabilities.
    """
    B = x.shape[0]
    tb, b_pad = _choose_tiling(B, tile_b)

    # Feature-major, lane-dense input (3, B_pad); pad fuses with the transpose.
    x_t = x.T.astype(jnp.float32)
    if b_pad != B:
        x_t = jnp.pad(x_t, ((0, 0), (0, b_pad - B)))

    # Transposed / folded parameters.
    w1t = jnp.asarray(w1, jnp.float32).T.reshape(_HIDDEN, 3)          # (128, 3)
    b1t = jnp.asarray(b1, jnp.float32).reshape(_HIDDEN, 1)            # (128, 1)
    w2f = jnp.asarray(w2, jnp.float32).reshape(_HIDDEN, 2)
    d = (w2f[:, 0] - w2f[:, 1]).reshape(_HIDDEN, 1)                   # (128, 1)
    b2f = jnp.asarray(b2, jnp.float32).reshape(-1)                    # (2,)
    db = (b2f[0] - b2f[1]).reshape(1)                                 # SMEM scalar

    grid = (b_pad // tb,)
    grid_spec = pltpu.PrefetchScalarGridSpec(
        num_scalar_prefetch=1,          # db lands in SMEM
        grid=grid,
        in_specs=[
            pl.BlockSpec((3, tb), lambda i, db: (0, i)),            # x (feature-major)
            pl.BlockSpec((_HIDDEN, 3), lambda i, db: (0, 0)),       # w1.T (resident)
            pl.BlockSpec((_HIDDEN, 1), lambda i, db: (0, 0)),       # b1.T (resident)
            pl.BlockSpec((_HIDDEN, 1), lambda i, db: (0, 0)),       # d    (resident)
        ],
        out_specs=pl.BlockSpec((1, tb), lambda i, db: (0, i)),       # p0 row
    )

    p0_row = pl.pallas_call(
        policy_kernel,
        out_shape=jax.ShapeDtypeStruct((1, b_pad), jnp.float32),
        grid_spec=grid_spec,
        compiler_params=pltpu.CompilerParams(
            dimension_semantics=("parallel",),  # batch tiles shard across TCs (v7x)
        ),
    )(db, x_t, w1t, b1t, d)

    p0 = p0_row[0, :B]
    return jnp.stack([p0, 1.0 - p0], axis=1)


def init_params(key):
    # Deterministic init mimicking PyTorch nn.Linear default:
    # U(-1/sqrt(fan_in), 1/sqrt(fan_in)) for both weight and bias.
    k1, k2, k3, k4 = jax.random.split(key, 4)
    bound1 = 1.0 / jnp.sqrt(3.0)
    bound2 = 1.0 / jnp.sqrt(128.0)
    w1 = jax.random.uniform(k1, (3, 128), jnp.float32, -bound1, bound1)
    b1 = jax.random.uniform(k2, (1, 128), jnp.float32, -bound1, bound1)
    w2 = jax.random.uniform(k3, (128, 2), jnp.float32, -bound2, bound2)
    b2 = jax.random.uniform(k4, (2,), jnp.float32, -bound2, bound2)
    return w1, b1, w2, b2


def reference_forward(x, w1, b1, w2, b2):
    h = jnp.maximum(x @ w1 + b1.reshape(1, -1), 0.0)
    s = h @ w2 + b2.reshape(1, -1)
    return jax.nn.softmax(s, axis=1)


if __name__ == "__main__":
    key = jax.random.PRNGKey(0)
    k_params, k_x1, k_x2 = jax.random.split(key, 3)

    w1, b1, w2, b2 = init_params(k_params)

    # Small batch, single-tile path (each state vector has 3 features).
    B = 8
    x = jax.random.normal(k_x1, (B, 3), dtype=jnp.float32)
    probs = jax.block_until_ready(policy_forward(x, w1, b1, w2, b2))
    ref = reference_forward(x, w1, b1, w2, b2)
    assert probs.shape == (B, 2)
    assert jnp.allclose(probs, ref, atol=1e-5, rtol=1e-5)
    assert jnp.allclose(jnp.sum(probs, axis=1), jnp.ones((B,)), atol=1e-5)

    # Multi-tile path (exercises the batch-tiled grid and padded tail).
    B2 = 300
    x2 = jax.random.normal(k_x2, (B2, 3), dtype=jnp.float32)
    probs2 = jax.block_until_ready(policy_forward(x2, w1, b1, w2, b2, tile_b=128))
    ref2 = reference_forward(x2, w1, b1, w2, b2)
    assert probs2.shape == (B2, 2)
    assert jnp.allclose(probs2, ref2, atol=1e-5, rtol=1e-5)
    assert jnp.allclose(jnp.sum(probs2, axis=1), jnp.ones((B2,)), atol=1e-5)

    print("KERNEL_OK")
</pallas_src>

<mosaic_0001>
module attributes {stable_mosaic.version = 11 : i64} {
  func.func @policy_kernel(%arg0: i32, %arg1: memref<1xf32, #tpu.memory_space<smem>>, %arg2: memref<3x128xf32, #tpu.memory_space<vmem>>, %arg3: memref<128x3xf32, #tpu.memory_space<vmem>>, %arg4: memref<128x1xf32, #tpu.memory_space<vmem>>, %arg5: memref<128x1xf32, #tpu.memory_space<vmem>>, %arg6: memref<1x128xf32, #tpu.memory_space<vmem>>) attributes {dimension_semantics = [#tpu.dimension_semantics<parallel>], iteration_bounds = array<i64: 1>, scalar_prefetch = 1 : i64, scratch_operands = 0 : i64, tpu.core_type = #tpu.core_type<tc>, window_params = [{transform_indices = @transform_0, window_bounds = array<i64: 3, 128>}, {pipeline_mode = #tpu.pipeline_mode<synchronous>, transform_indices = @transform_1, window_bounds = array<i64: 128, 3>}, {pipeline_mode = #tpu.pipeline_mode<synchronous>, transform_indices = @transform_2, window_bounds = array<i64: 128, 1>}, {pipeline_mode = #tpu.pipeline_mode<synchronous>, transform_indices = @transform_3, window_bounds = array<i64: 128, 1>}, {transform_indices = @transform_4, window_bounds = array<i64: 1, 128>}]} {
    %c0 = arith.constant 0 : index
    %c0_0 = arith.constant 0 : index
    %0 = vector.load %arg2[%c0, %c0_0] : memref<3x128xf32, #tpu.memory_space<vmem>>, vector<3x128xf32>
    %c0_1 = arith.constant 0 : index
    %c0_2 = arith.constant 0 : index
    %1 = vector.load %arg3[%c0_1, %c0_2] : memref<128x3xf32, #tpu.memory_space<vmem>>, vector<128x3xf32>
    %2 = vector.extract_strided_slice %1 {offsets = [0, 0], sizes = [128, 1], strides = [1, 1]} : vector<128x3xf32> to vector<128x1xf32>
    %3 = vector.extract_strided_slice %0 {offsets = [0, 0], sizes = [1, 128], strides = [1, 1]} : vector<3x128xf32> to vector<1x128xf32>
    %4 = vector.broadcast %2 : vector<128x1xf32> to vector<128x128xf32>
    %5 = vector.broadcast %3 : vector<1x128xf32> to vector<128x128xf32>
    %6 = arith.mulf %4, %5 : vector<128x128xf32>
    %7 = vector.extract_strided_slice %1 {offsets = [0, 1], sizes = [128, 1], strides = [1, 1]} : vector<128x3xf32> to vector<128x1xf32>
    %8 = vector.extract_strided_slice %0 {offsets = [1, 0], sizes = [1, 128], strides = [1, 1]} : vector<3x128xf32> to vector<1x128xf32>
    %9 = vector.broadcast %7 : vector<128x1xf32> to vector<128x128xf32>
    %10 = vector.broadcast %8 : vector<1x128xf32> to vector<128x128xf32>
    %11 = arith.mulf %9, %10 : vector<128x128xf32>
    %12 = arith.addf %6, %11 : vector<128x128xf32>
    %13 = vector.extract_strided_slice %1 {offsets = [0, 2], sizes = [128, 1], strides = [1, 1]} : vector<128x3xf32> to vector<128x1xf32>
    %14 = vector.extract_strided_slice %0 {offsets = [2, 0], sizes = [1, 128], strides = [1, 1]} : vector<3x128xf32> to vector<1x128xf32>
    %15 = vector.broadcast %13 : vector<128x1xf32> to vector<128x128xf32>
    %16 = vector.broadcast %14 : vector<1x128xf32> to vector<128x128xf32>
    %17 = arith.mulf %15, %16 : vector<128x128xf32>
    %18 = arith.addf %12, %17 : vector<128x128xf32>
    %c0_3 = arith.constant 0 : index
    %c0_4 = arith.constant 0 : index
    %19 = vector.load %arg4[%c0_3, %c0_4] : memref<128x1xf32, #tpu.memory_space<vmem>>, vector<128x1xf32>
    %20 = vector.broadcast %19 : vector<128x1xf32> to vector<128x128xf32>
    %21 = arith.addf %18, %20 : vector<128x128xf32>
    %cst = arith.constant 0.000000e+00 : f32
    %22 = vector.broadcast %cst : f32 to vector<128x128xf32>
    %23 = arith.maximumf %21, %22 : vector<128x128xf32>
    %c0_5 = arith.constant 0 : index
    %c0_6 = arith.constant 0 : index
    %24 = vector.load %arg5[%c0_5, %c0_6] : memref<128x1xf32, #tpu.memory_space<vmem>>, vector<128x1xf32>
    %25 = vector.broadcast %24 : vector<128x1xf32> to vector<128x128xf32>
    %26 = arith.mulf %23, %25 : vector<128x128xf32>
    %cst_7 = arith.constant dense<0.000000e+00> : vector<128xf32>
    %27 = vector.multi_reduction <add>, %26, %cst_7 [0] : vector<128x128xf32> to vector<128xf32>
    %28 = vector.shape_cast %27 : vector<128xf32> to vector<1x128xf32>
    %c0_8 = arith.constant 0 : index
    %29 = memref.load %arg1[%c0_8] : memref<1xf32, #tpu.memory_space<smem>>
    %30 = vector.broadcast %29 : f32 to vector<1x128xf32>
    %31 = arith.addf %28, %30 : vector<1x128xf32>
    %cst_9 = arith.constant 0.000000e+00 : f32
    %32 = vector.broadcast %cst_9 : f32 to vector<1x128xf32>
    %33 = arith.subf %32, %31 : vector<1x128xf32>
    %34 = math.exp %33 : vector<1x128xf32>
    %cst_10 = arith.constant 1.000000e+00 : f32
    %35 = vector.broadcast %cst_10 : f32 to vector<1x128xf32>
    %36 = arith.addf %35, %34 : vector<1x128xf32>
    %cst_11 = arith.constant 1.000000e+00 : f32
    %37 = vector.broadcast %cst_11 : f32 to vector<1x128xf32>
    %38 = arith.divf %37, %36 : vector<1x128xf32>
    %c0_12 = arith.constant 0 : index
    %c0_13 = arith.constant 0 : index
    %39 = vector.load %arg6[%c0_12, %c0_13] : memref<1x128xf32, #tpu.memory_space<vmem>>, vector<1x128xf32>
    tpu.vector_store %arg6[%c0_12, %c0_13], %38 {strides = array<i32>} : memref<1x128xf32, #tpu.memory_space<vmem>>, vector<1x128xf32>,
    return
  }
  func.func @transform_0(%arg0: i32, %arg1: memref<1xf32, #tpu.memory_space<smem>>) -> (i32, i32) {
    %c0_i32 = arith.constant 0 : i32
    %c0_i32_0 = arith.constant 0 : i32
    return %c0_i32, %arg0 : i32, i32
  }
  func.func @transform_1(%arg0: i32, %arg1: memref<1xf32, #tpu.memory_space<smem>>) -> (i32, i32) {
    %c0_i32 = arith.constant 0 : i32
    %c0_i32_0 = arith.constant 0 : i32
    %c0_i32_1 = arith.constant 0 : i32
    return %c0_i32, %c0_i32_0 : i32, i32
  }
  func.func @transform_2(%arg0: i32, %arg1: memref<1xf32, #tpu.memory_space<smem>>) -> (i32, i32) {
    %c0_i32 = arith.constant 0 : i32
    %c0_i32_0 = arith.constant 0 : i32
    %c0_i32_1 = arith.constant 0 : i32
    return %c0_i32, %c0_i32_0 : i32, i32
  }
  func.func @transform_3(%arg0: i32, %arg1: memref<1xf32, #tpu.memory_space<smem>>) -> (i32, i32) {
    %c0_i32 = arith.constant 0 : i32
    %c0_i32_0 = arith.constant 0 : i32
    %c0_i32_1 = arith.constant 0 : i32
    return %c0_i32, %c0_i32_0 : i32, i32
  }
  func.func @transform_4(%arg0: i32, %arg1: memref<1xf32, #tpu.memory_space<smem>>) -> (i32, i32) {
    %c0_i32 = arith.constant 0 : i32
    %c0_i32_0 = arith.constant 0 : i32
    return %c0_i32, %arg0 : i32, i32
  }
}

</mosaic_0001>

<llo_original>
// kernel: tpu_custom_call.1
$region0: #{tpu_custom_call.1}
  #allocation0 [shape = 'u32[]', space=smem, size = 0x4, offset = 0x4, fixed_abs, tag = 'smem constant byte address 0x4 - core index']
  #allocation1 [shape = 'u32[144,128]{1,0:T(1,128)}', space=vmem, size = 0x12000, scoped, tag = 'internal scratch']
  #allocation2 [shape = 's32[1]{0}', space=sflag, size = 0x4, scoped, tag = 'scoped memory for tpu_custom_call.1']
  #allocation3 [shape = 'f32[1]{0:T(128)S(6)}', space=smem, size = 0x200, scoped, tag = 'prefetched SMEM operand 0']
  %s0 = inlined_call_operand.<no memory space> [shape: f32[1], index: 0, kind: input, shape index: {}]
  %s1 = inlined_call_operand.vmem [shape: f32[3,128], index: 1, kind: input, shape index: {}]
  %s2 = inlined_call_operand.vmem [shape: f32[128,3], index: 2, kind: input, shape index: {}]
  %s3 = inlined_call_operand.vmem [shape: f32[128,1], index: 3, kind: input, shape index: {}]
  %s4 = inlined_call_operand.vmem [shape: f32[128,1], index: 4, kind: input, shape index: {}]
  %s5 = inlined_call_operand.hbm [shape: f32[1,128], index: 5, kind: output, shape index: {}]
  %s6 = sld [smem:[#allocation0]]
  $region26: #{tpu_custom_call.1} parent=0
    _
  %s8 = ssub.s32 1, %s6
  %s9 = scalar_select 0, %s8, %s6
  %10 = sst [smem:[#allocation3]] %s0
  $region1: #{tpu_custom_call.1} parent=0
    #allocation4 [shape = 'u8[512]{0}', space=vmem, size = 0x400, scoped, tag = 'output window, operand 0, single buffered']
    #allocation5 [shape = 's32[1]{0}', space=sflag, size = 0x4, scoped, tag = 'scoped memory for tpu_custom_call.1']
    %11 = vsyncpa [#allocation5], 0
    // Predicated region
    $region2: #{tpu_custom_call.1} parent=1 // pred_check
      _
    $region3: #{tpu_custom_call.1} parent=1 // pred_check_branch
      %13 = sbr.rel (0) target = $region5
    $region4: #{tpu_custom_call.1} parent=1 // pred_region
      _
    $region5: #{tpu_custom_call.1} parent=1 // pred_fallthru
      _
    // Predicated region
    $region6: #{tpu_custom_call.1} parent=1 // pred_check
      _
    $region7: #{tpu_custom_call.1} parent=1 // pred_check_branch
      %15 = sbr.rel (0) target = $region9
    $region8: #{tpu_custom_call.1} parent=1 // pred_region
      _
    $region9: #{tpu_custom_call.1} parent=1 // pred_fallthru
      _
    // Predicated region
    $region10: #{tpu_custom_call.1} parent=1 // pred_check
      _
    $region11: #{tpu_custom_call.1} parent=1 // pred_check_branch
      %17 = sbr.rel (0) target = $region13
    $region12: #{tpu_custom_call.1} parent=1 // pred_region
      _
    $region13: #{tpu_custom_call.1} parent=1 // pred_fallthru
      _
    // Predicated region
    $region14: #{tpu_custom_call.1} parent=1 // pred_check
      _
    $region15: #{tpu_custom_call.1} parent=1 // pred_check_branch
      %19 = sbr.rel (0) target = $region17
    $region16: #{tpu_custom_call.1} parent=1 // pred_region
      _
    $region17: #{tpu_custom_call.1} parent=1 // pred_fallthru
      _
    %v20 = vld [vmem:[%s1] sm:$0x7]
    %v21 = vld [vmem:[%s2] sm:$0xff]
    %v22 = vld [vmem:[%s2 + $0x8] sm:$0xff]
    %v23 = vld [vmem:[%s2 + $0x10] sm:$0xff]
    %v24 = vld [vmem:[%s2 + $0x18] sm:$0xff]
    %v25 = vld [vmem:[%s2 + $0x20] sm:$0xff]
    %v26 = vld [vmem:[%s2 + $0x28] sm:$0xff]
    %v27 = vld [vmem:[%s2 + $0x30] sm:$0xff]
    %v28 = vld [vmem:[%s2 + $0x38] sm:$0xff]
    %v29 = vld [vmem:[%s2 + $0x40] sm:$0xff]
    %v30 = vld [vmem:[%s2 + $0x48] sm:$0xff]
    %v31 = vld [vmem:[%s2 + $0x50] sm:$0xff]
    %v32 = vld [vmem:[%s2 + $0x58] sm:$0xff]
    %v33 = vld [vmem:[%s2 + $0x60] sm:$0xff]
    %v34 = vld [vmem:[%s2 + $0x68] sm:$0xff]
    %v35 = vld [vmem:[%s2 + $0x70] sm:$0xff]
    %v36 = vld [vmem:[%s2 + $0x78] sm:$0xff]
    %38 = vset.pattern.permute.xlu0 0
    %39 = vperm.xlu0 %38, %v21
    %v40 = vpop.permute.xlu0 %39
    %43 = vset.pattern.permute.xlu0 0
    %44 = vperm.xlu0 %43, %v22
    %v45 = vpop.permute.xlu0 %44
    %48 = vset.pattern.permute.xlu0 0
    %49 = vperm.xlu0 %48, %v23
    %v50 = vpop.permute.xlu0 %49
    %53 = vset.pattern.permute.xlu0 0
    %54 = vperm.xlu0 %53, %v24
    %v55 = vpop.permute.xlu0 %54
    %58 = vset.pattern.permute.xlu0 0
    %59 = vperm.xlu0 %58, %v25
    %v60 = vpop.permute.xlu0 %59
    %63 = vset.pattern.permute.xlu0 0
    %64 = vperm.xlu0 %63, %v26
    %v65 = vpop.permute.xlu0 %64
    %68 = vset.pattern.permute.xlu0 0
    %69 = vperm.xlu0 %68, %v27
    %v70 = vpop.permute.xlu0 %69
    %73 = vset.pattern.permute.xlu0 0
    %74 = vperm.xlu0 %73, %v28
    %v75 = vpop.permute.xlu0 %74
    %78 = vset.pattern.permute.xlu0 0
    %79 = vperm.xlu0 %78, %v29
    %v80 = vpop.permute.xlu0 %79
    %83 = vset.pattern.permute.xlu0 0
    %84 = vperm.xlu0 %83, %v30
    %v85 = vpop.permute.xlu0 %84
    %88 = vset.pattern.permute.xlu0 0
    %89 = vperm.xlu0 %88, %v31
    %v90 = vpop.permute.xlu0 %89
    %93 = vset.pattern.permute.xlu0 0
    %94 = vperm.xlu0 %93, %v32
    %v95 = vpop.permute.xlu0 %94
    %98 = vset.pattern.permute.xlu0 0
    %99 = vperm.xlu0 %98, %v33
    %v100 = vpop.permute.xlu0 %99
    %103 = vset.pattern.permute.xlu0 0
    %104 = vperm.xlu0 %103, %v34
    %v105 = vpop.permute.xlu0 %104
    %108 = vset.pattern.permute.xlu0 0
    %109 = vperm.xlu0 %108, %v35
    %v110 = vpop.permute.xlu0 %109
    %113 = vset.pattern.permute.xlu0 0
    %114 = vperm.xlu0 %113, %v36
    %v115 = vpop.permute.xlu0 %114
    %v117 = vlaneseq
    %v118 = vshrl.u32 %v117, 7
    %v119 = vsub.s32 0, %v118
    %v120 = vrot.slane %v20, %v119
    %v121 = vmul.f32 %v40, %v120
    %v122 = vmul.f32 %v45, %v120
    %v123 = vmul.f32 %v50, %v120
    %v124 = vmul.f32 %v55, %v120
    %v125 = vmul.f32 %v60, %v120
    %v126 = vmul.f32 %v65, %v120
    %v127 = vmul.f32 %v70, %v120
    %v128 = vmul.f32 %v75, %v120
    %v129 = vmul.f32 %v80, %v120
    %v130 = vmul.f32 %v85, %v120
    %v131 = vmul.f32 %v90, %v120
    %v132 = vmul.f32 %v95, %v120
    %v133 = vmul.f32 %v100, %v120
    %v134 = vmul.f32 %v105, %v120
    %v135 = vmul.f32 %v110, %v120
    %v136 = vmul.f32 %v115, %v120
    %137 = vset.pattern.permute.xlu0 1
    %138 = vperm.xlu0 %137, %v21
    %v139 = vpop.permute.xlu0 %138
    %141 = vset.pattern.permute.xlu0 1
    %142 = vperm.xlu0 %141, %v22
    %v143 = vpop.permute.xlu0 %142
    %145 = vset.pattern.permute.xlu0 1
    %146 = vperm.xlu0 %145, %v23
    %v147 = vpop.permute.xlu0 %146
    %149 = vset.pattern.permute.xlu0 1
    %150 = vperm.xlu0 %149, %v24
    %v151 = vpop.permute.xlu0 %150
    %153 = vset.pattern.permute.xlu0 1
    %154 = vperm.xlu0 %153, %v25
    %v155 = vpop.permute.xlu0 %154
    %157 = vset.pattern.permute.xlu0 1
    %158 = vperm.xlu0 %157, %v26
    %v159 = vpop.permute.xlu0 %158
    %161 = vset.pattern.permute.xlu0 1
    %162 = vperm.xlu0 %161, %v27
    %v163 = vpop.permute.xlu0 %162
    %165 = vset.pattern.permute.xlu0 1
    %166 = vperm.xlu0 %165, %v28
    %v167 = vpop.permute.xlu0 %166
    %169 = vset.pattern.permute.xlu0 1
    %170 = vperm.xlu0 %169, %v29
    %v171 = vpop.permute.xlu0 %170
    %173 = vset.pattern.permute.xlu0 1
    %174 = vperm.xlu0 %173, %v30
    %v175 = vpop.permute.xlu0 %174
    %177 = vset.pattern.permute.xlu0 1
    %178 = vperm.xlu0 %177, %v31
    %v179 = vpop.permute.xlu0 %178
    %181 = vset.pattern.permute.xlu0 1
    %182 = vperm.xlu0 %181, %v32
    %v183 = vpop.permute.xlu0 %182
    %185 = vset.pattern.permute.xlu0 1
    %186 = vperm.xlu0 %185, %v33
    %v187 = vpop.permute.xlu0 %186
    %189 = vset.pattern.permute.xlu0 1
    %190 = vperm.xlu0 %189, %v34
    %v191 = vpop.permute.xlu0 %190
    %193 = vset.pattern.permute.xlu0 1
    %194 = vperm.xlu0 %193, %v35
    %v195 = vpop.permute.xlu0 %194
    %197 = vset.pattern.permute.xlu0 1
    %198 = vperm.xlu0 %197, %v36
    %v199 = vpop.permute.xlu0 %198
    %v201 = vlaneseq
    %v202 = vshrl.u32 %v201, 7
    %v203 = vsub.s32 1, %v202
    %v204 = vrot.slane %v20, %v203
    %v205 = vmul.f32 %v139, %v204
    %v206 = vmul.f32 %v143, %v204
    %v207 = vmul.f32 %v147, %v204
    %v208 = vmul.f32 %v151, %v204
    %v209 = vmul.f32 %v155, %v204
    %v210 = vmul.f32 %v159, %v204
    %v211 = vmul.f32 %v163, %v204
    %v212 = vmul.f32 %v167, %v204
    %v213 = vmul.f32 %v171, %v204
    %v214 = vmul.f32 %v175, %v204
    %v215 = vmul.f32 %v179, %v204
    %v216 = vmul.f32 %v183, %v204
    %v217 = vmul.f32 %v187, %v204
    %v218 = vmul.f32 %v191, %v204
    %v219 = vmul.f32 %v195, %v204
    %v220 = vmul.f32 %v199, %v204
    %v221 = vadd.f32 %v121, %v205
    %v222 = vadd.f32 %v122, %v206
    %v223 = vadd.f32 %v123, %v207
    %v224 = vadd.f32 %v124, %v208
    %v225 = vadd.f32 %v125, %v209
    %v226 = vadd.f32 %v126, %v210
    %v227 = vadd.f32 %v127, %v211
    %v228 = vadd.f32 %v128, %v212
    %v229 = vadd.f32 %v129, %v213
    %v230 = vadd.f32 %v130, %v214
    %v231 = vadd.f32 %v131, %v215
    %v232 = vadd.f32 %v132, %v216
    %v233 = vadd.f32 %v133, %v217
    %v234 = vadd.f32 %v134, %v218
    %v235 = vadd.f32 %v135, %v219
    %v236 = vadd.f32 %v136, %v220
    %237 = vset.pattern.permute.xlu0 2
    %238 = vperm.xlu0 %237, %v21
    %v239 = vpop.permute.xlu0 %238
    %241 = vset.pattern.permute.xlu0 2
    %242 = vperm.xlu0 %241, %v22
    %v243 = vpop.permute.xlu0 %242
    %245 = vset.pattern.permute.xlu0 2
    %246 = vperm.xlu0 %245, %v23
    %v247 = vpop.permute.xlu0 %246
    %249 = vset.pattern.permute.xlu0 2
    %250 = vperm.xlu0 %249, %v24
    %v251 = vpop.permute.xlu0 %250
    %253 = vset.pattern.permute.xlu0 2
    %254 = vperm.xlu0 %253, %v25
    %v255 = vpop.permute.xlu0 %254
    %257 = vset.pattern.permute.xlu0 2
    %258 = vperm.xlu0 %257, %v26
    %v259 = vpop.permute.xlu0 %258
    %261 = vset.pattern.permute.xlu0 2
    %262 = vperm.xlu0 %261, %v27
    %v263 = vpop.permute.xlu0 %262
    %265 = vset.pattern.permute.xlu0 2
    %266 = vperm.xlu0 %265, %v28
    %v267 = vpop.permute.xlu0 %266
    %269 = vset.pattern.permute.xlu0 2
    %270 = vperm.xlu0 %269, %v29
    %v271 = vpop.permute.xlu0 %270
    %273 = vset.pattern.permute.xlu0 2
    %274 = vperm.xlu0 %273, %v30
    %v275 = vpop.permute.xlu0 %274
    %277 = vset.pattern.permute.xlu0 2
    %278 = vperm.xlu0 %277, %v31
    %v279 = vpop.permute.xlu0 %278
    %281 = vset.pattern.permute.xlu0 2
    %282 = vperm.xlu0 %281, %v32
    %v283 = vpop.permute.xlu0 %282
    %285 = vset.pattern.permute.xlu0 2
    %286 = vperm.xlu0 %285, %v33
    %v287 = vpop.permute.xlu0 %286
    %289 = vset.pattern.permute.xlu0 2
    %290 = vperm.xlu0 %289, %v34
    %v291 = vpop.permute.xlu0 %290
    %293 = vset.pattern.permute.xlu0 2
    %294 = vperm.xlu0 %293, %v35
    %v295 = vpop.permute.xlu0 %294
    %297 = vset.pattern.permute.xlu0 2
    %298 = vperm.xlu0 %297, %v36
    %v299 = vpop.permute.xlu0 %298
    %v301 = vlaneseq
    %v302 = vshrl.u32 %v301, 7
    %v303 = vsub.s32 2, %v302
    %v304 = vrot.slane %v20, %v303
    %v305 = vmul.f32 %v239, %v304
    %v306 = vmul.f32 %v243, %v304
    %v307 = vmul.f32 %v247, %v304
    %v308 = vmul.f32 %v251, %v304
    %v309 = vmul.f32 %v255, %v304
    %v310 = vmul.f32 %v259, %v304
    %v311 = vmul.f32 %v263, %v304
    %v312 = vmul.f32 %v267, %v304
    %v313 = vmul.f32 %v271, %v304
    %v314 = vmul.f32 %v275, %v304
    %v315 = vmul.f32 %v279, %v304
    %v316 = vmul.f32 %v283, %v304
    %v317 = vmul.f32 %v287, %v304
    %v318 = vmul.f32 %v291, %v304
    %v319 = vmul.f32 %v295, %v304
    %v320 = vmul.f32 %v299, %v304
    %v321 = vadd.f32 %v221, %v305
    %v322 = vadd.f32 %v222, %v306
    %v323 = vadd.f32 %v223, %v307
    %v324 = vadd.f32 %v224, %v308
    %v325 = vadd.f32 %v225, %v309
    %v326 = vadd.f32 %v226, %v310
    %v327 = vadd.f32 %v227, %v311
    %v328 = vadd.f32 %v228, %v312
    %v329 = vadd.f32 %v229, %v313
    %v330 = vadd.f32 %v230, %v314
    %v331 = vadd.f32 %v231, %v315
    %v332 = vadd.f32 %v232, %v316
    %v333 = vadd.f32 %v233, %v317
    %v334 = vadd.f32 %v234, %v318
    %v335 = vadd.f32 %v235, %v319
    %v336 = vadd.f32 %v236, %v320
    %v337 = vld [vmem:[%s3] sm:$0xff]
    %v338 = vld [vmem:[%s3 + $0x8] sm:$0xff]
    %v339 = vld [vmem:[%s3 + $0x10] sm:$0xff]
    %v340 = vld [vmem:[%s3 + $0x18] sm:$0xff]
    %v341 = vld [vmem:[%s3 + $0x20] sm:$0xff]
    %v342 = vld [vmem:[%s3 + $0x28] sm:$0xff]
    %v343 = vld [vmem:[%s3 + $0x30] sm:$0xff]
    %v344 = vld [vmem:[%s3 + $0x38] sm:$0xff]
    %v345 = vld [vmem:[%s3 + $0x40] sm:$0xff]
    %v346 = vld [vmem:[%s3 + $0x48] sm:$0xff]
    %v347 = vld [vmem:[%s3 + $0x50] sm:$0xff]
    %v348 = vld [vmem:[%s3 + $0x58] sm:$0xff]
    %v349 = vld [vmem:[%s3 + $0x60] sm:$0xff]
    %v350 = vld [vmem:[%s3 + $0x68] sm:$0xff]
    %v351 = vld [vmem:[%s3 + $0x70] sm:$0xff]
    %v352 = vld [vmem:[%s3 + $0x78] sm:$0xff]
    %354 = vset.pattern.permute.xlu0 0
    %355 = vperm.xlu0 %354, %v337
    %v356 = vpop.permute.xlu0 %355
    %359 = vset.pattern.permute.xlu0 0
    %360 = vperm.xlu0 %359, %v338
    %v361 = vpop.permute.xlu0 %360
    %364 = vset.pattern.permute.xlu0 0
    %365 = vperm.xlu0 %364, %v339
    %v366 = vpop.permute.xlu0 %365
    %369 = vset.pattern.permute.xlu0 0
    %370 = vperm.xlu0 %369, %v340
    %v371 = vpop.permute.xlu0 %370
    %374 = vset.pattern.permute.xlu0 0
    %375 = vperm.xlu0 %374, %v341
    %v376 = vpop.permute.xlu0 %375
    %379 = vset.pattern.permute.xlu0 0
    %380 = vperm.xlu0 %379, %v342
    %v381 = vpop.permute.xlu0 %380
    %384 = vset.pattern.permute.xlu0 0
    %385 = vperm.xlu0 %384, %v343
    %v386 = vpop.permute.xlu0 %385
    %389 = vset.pattern.permute.xlu0 0
    %390 = vperm.xlu0 %389, %v344
    %v391 = vpop.permute.xlu0 %390
    %394 = vset.pattern.permute.xlu0 0
    %395 = vperm.xlu0 %394, %v345
    %v396 = vpop.permute.xlu0 %395
    %399 = vset.pattern.permute.xlu0 0
    %400 = vperm.xlu0 %399, %v346
    %v401 = vpop.permute.xlu0 %400
    %404 = vset.pattern.permute.xlu0 0
    %405 = vperm.xlu0 %404, %v347
    %v406 = vpop.permute.xlu0 %405
    %409 = vset.pattern.permute.xlu0 0
    %410 = vperm.xlu0 %409, %v348
    %v411 = vpop.permute.xlu0 %410
    %414 = vset.pattern.permute.xlu0 0
    %415 = vperm.xlu0 %414, %v349
    %v416 = vpop.permute.xlu0 %415
    %419 = vset.pattern.permute.xlu0 0
    %420 = vperm.xlu0 %419, %v350
    %v421 = vpop.permute.xlu0 %420
    %424 = vset.pattern.permute.xlu0 0
    %425 = vperm.xlu0 %424, %v351
    %v426 = vpop.permute.xlu0 %425
    %429 = vset.pattern.permute.xlu0 0
    %430 = vperm.xlu0 %429, %v352
    %v431 = vpop.permute.xlu0 %430
    %v433 = vadd.f32 %v321, %v356
    %v434 = vadd.f32 %v322, %v361
    %v435 = vadd.f32 %v323, %v366
    %v436 = vadd.f32 %v324, %v371
    %v437 = vadd.f32 %v325, %v376
    %v438 = vadd.f32 %v326, %v381
    %v439 = vadd.f32 %v327, %v386
    %v440 = vadd.f32 %v328, %v391
    %v441 = vadd.f32 %v329, %v396
    %v442 = vadd.f32 %v330, %v401
    %v443 = vadd.f32 %v331, %v406
    %v444 = vadd.f32 %v332, %v411
    %v445 = vadd.f32 %v333, %v416
    %v446 = vadd.f32 %v334, %v421
    %v447 = vadd.f32 %v335, %v426
    %v448 = vadd.f32 %v336, %v431
    %v449 = vmax.f32 %v433, 0.0
    %v450 = vmax.f32 %v434, 0.0
    %v451 = vmax.f32 %v435, 0.0
    %v452 = vmax.f32 %v436, 0.0
    %v453 = vmax.f32 %v437, 0.0
    %v454 = vmax.f32 %v438, 0.0
    %v455 = vmax.f32 %v439, 0.0
    %v456 = vmax.f32 %v440, 0.0
    %v457 = vmax.f32 %v441, 0.0
    %v458 = vmax.f32 %v442, 0.0
    %v459 = vmax.f32 %v443, 0.0
    %v460 = vmax.f32 %v444, 0.0
    %v461 = vmax.f32 %v445, 0.0
    %v462 = vmax.f32 %v446, 0.0
    %v463 = vmax.f32 %v447, 0.0
    %v464 = vmax.f32 %v448, 0.0
    %v465 = vld [vmem:[%s4] sm:$0xff]
    %v466 = vld [vmem:[%s4 + $0x8] sm:$0xff]
    %v467 = vld [vmem:[%s4 + $0x10] sm:$0xff]
    %v468 = vld [vmem:[%s4 + $0x18] sm:$0xff]
    %v469 = vld [vmem:[%s4 + $0x20] sm:$0xff]
    %v470 = vld [vmem:[%s4 + $0x28] sm:$0xff]
    %v471 = vld [vmem:[%s4 + $0x30] sm:$0xff]
    %v472 = vld [vmem:[%s4 + $0x38] sm:$0xff]
    %v473 = vld [vmem:[%s4 + $0x40] sm:$0xff]
    %v474 = vld [vmem:[%s4 + $0x48] sm:$0xff]
    %v475 = vld [vmem:[%s4 + $0x50] sm:$0xff]
    %v476 = vld [vmem:[%s4 + $0x58] sm:$0xff]
    %v477 = vld [vmem:[%s4 + $0x60] sm:$0xff]
    %v478 = vld [vmem:[%s4 + $0x68] sm:$0xff]
    %v479 = vld [vmem:[%s4 + $0x70] sm:$0xff]
    %v480 = vld [vmem:[%s4 + $0x78] sm:$0xff]
    %482 = vset.pattern.permute.xlu0 0
    %483 = vperm.xlu0 %482, %v465
    %v484 = vpop.permute.xlu0 %483
    %487 = vset.pattern.permute.xlu0 0
    %488 = vperm.xlu0 %487, %v466
    %v489 = vpop.permute.xlu0 %488
    %492 = vset.pattern.permute.xlu0 0
    %493 = vperm.xlu0 %492, %v467
    %v494 = vpop.permute.xlu0 %493
    %497 = vset.pattern.permute.xlu0 0
    %498 = vperm.xlu0 %497, %v468
    %v499 = vpop.permute.xlu0 %498
    %502 = vset.pattern.permute.xlu0 0
    %503 = vperm.xlu0 %502, %v469
    %v504 = vpop.permute.xlu0 %503
    %507 = vset.pattern.permute.xlu0 0
    %508 = vperm.xlu0 %507, %v470
    %v509 = vpop.permute.xlu0 %508
    %512 = vset.pattern.permute.xlu0 0
    %513 = vperm.xlu0 %512, %v471
    %v514 = vpop.permute.xlu0 %513
    %517 = vset.pattern.permute.xlu0 0
    %518 = vperm.xlu0 %517, %v472
    %v519 = vpop.permute.xlu0 %518
    %522 = vset.pattern.permute.xlu0 0
    %523 = vperm.xlu0 %522, %v473
    %v524 = vpop.permute.xlu0 %523
    %527 = vset.pattern.permute.xlu0 0
    %528 = vperm.xlu0 %527, %v474
    %v529 = vpop.permute.xlu0 %528
    %532 = vset.pattern.permute.xlu0 0
    %533 = vperm.xlu0 %532, %v475
    %v534 = vpop.permute.xlu0 %533
    %537 = vset.pattern.permute.xlu0 0
    %538 = vperm.xlu0 %537, %v476
    %v539 = vpop.permute.xlu0 %538
    %542 = vset.pattern.permute.xlu0 0
    %543 = vperm.xlu0 %542, %v477
    %v544 = vpop.permute.xlu0 %543
    %547 = vset.pattern.permute.xlu0 0
    %548 = vperm.xlu0 %547, %v478
    %v549 = vpop.permute.xlu0 %548
    %552 = vset.pattern.permute.xlu0 0
    %553 = vperm.xlu0 %552, %v479
    %v554 = vpop.permute.xlu0 %553
    %557 = vset.pattern.permute.xlu0 0
    %558 = vperm.xlu0 %557, %v480
    %v559 = vpop.permute.xlu0 %558
    %v561 = vmul.f32 %v449, %v484
    %v562 = vmul.f32 %v450, %v489
    %v563 = vmul.f32 %v451, %v494
    %v564 = vmul.f32 %v452, %v499
    %v565 = vmul.f32 %v453, %v504
    %v566 = vmul.f32 %v454, %v509
    %v567 = vmul.f32 %v455, %v514
    %v568 = vmul.f32 %v456, %v519
    %v569 = vmul.f32 %v457, %v524
    %v570 = vmul.f32 %v458, %v529
    %v571 = vmul.f32 %v459, %v534
    %v572 = vmul.f32 %v460, %v539
    %v573 = vmul.f32 %v461, %v544
    %v574 = vmul.f32 %v462, %v549
    %v575 = vmul.f32 %v463, %v554
    %v576 = vmul.f32 %v464, %v559
    %v577 = vadd.f32 %v561, %v562
    %v578 = vadd.f32 %v577, %v563
    %v579 = vadd.f32 %v578, %v564
    %v580 = vadd.f32 %v579, %v565
    %v581 = vadd.f32 %v580, %v566
    %v582 = vadd.f32 %v581, %v567
    %v583 = vadd.f32 %v582, %v568
    %v584 = vadd.f32 %v583, %v569
    %v585 = vadd.f32 %v584, %v570
    %v586 = vadd.f32 %v585, %v571
    %v587 = vadd.f32 %v586, %v572
    %v588 = vadd.f32 %v587, %v573
    %v589 = vadd.f32 %v588, %v574
    %v590 = vadd.f32 %v589, %v575
    %v591 = vadd.f32 %v590, %v576
    %v592 = vrot.slane %v591, 4
    %v593 = vadd.f32 %v591, %v592
    %v594 = vrot.slane %v593, 2
    %v595 = vadd.f32 %v593, %v594
    %v596 = vrot.slane %v595, 1
    %v597 = vadd.f32 %v595, %v596
    %s598 = sld [smem:[#allocation3]]
    %v599 = vstv %s598
    %v600 = vadd.f32 %v597, %v599
    %v601 = vsub.f32 0.0, %v600
    %v602 = vmul.f32 %v601, 1.442695
    %v603 = vpow.pop %v602
    %v604 = vadd.f32 %v603, 1.0
    %v605 = vrcp.pop %v604
    %v606 = vmul.f32 1.0, %v605
    %607 = vst [vmem:[#allocation4] sm:$0x1] %v606
    // Predicated region
    $region18: #{tpu_custom_call.1} parent=1 // pred_check
      _
    $region19: #{tpu_custom_call.1} parent=1 // pred_check_branch
      %609 = sbr.rel (0) target = $region21
    $region20: #{tpu_custom_call.1} parent=1 // pred_region
      %s611 = ssub.s32 16, 16
      %612 = vsyncadd [#allocation5], %s611
      %s614 = sshll.u32 [#allocation4], 4
      %s615 = int_to_ptr.vmem [resolvable:$true] %s614
      %617 = dma.vmem_to_hbm [thread:$0]  %s615, 16, %s5, [#allocation5]
    $region21: #{tpu_custom_call.1} parent=1 // pred_fallthru
      _
    // Predicated region
    $region22: #{tpu_custom_call.1} parent=1 // pred_check
      _
    $region23: #{tpu_custom_call.1} parent=1 // pred_check_branch
      %619 = sbr.rel (0) target = $region25
    $region24: #{tpu_custom_call.1} parent=1 // pred_region
      %620 = dma.done [#allocation5], 16
    $region25: #{tpu_custom_call.1} parent=1 // pred_fallthru
      _
    %621 = vsyncpa [#allocation5], 1

</llo_original>
